<compile_context>
chip_gen: v6e
topology: v6e:2x2x1
jax: 0.10.0
libtpu: 0.0.40
codegen_flags: <defaults>
</compile_context>

<pallas_src>
import jax
import jax.numpy as jnp
from jax import lax
from jax.experimental import pallas as pl
from jax.experimental.pallas import tpu as pltpu

EPS = 1e-5


def _cnn_kernel(cw_ref,      # SMEM (9,): BN-folded 3x3 conv taps
                x_ref,       # VMEM (H+2, N, W+2): zero-padded input, (h, n, w)
                p_ref,       # VMEM (44, 17): fc1 W | fc1 b | bn1 s/h | fc2 W^T | fc2 b | bias map
                out_ref):    # VMEM (N, 4): softmax probabilities
    Hp, N, Wp = x_ref.shape
    H, W = Hp - 2, Wp - 2

    # Fused  BN2d(in) -> Conv2d(3x3, pad=1) -> BN2d(out):
    #   conv = sum_taps cw[dh,dw] * x_pad[dh:dh+H, :, dw:dw+W]  +  bias_map
    # dh offsets are leading-axis slices (free register selects); dw offsets
    # are static lane slices (XLU slot, idle here).  Three per-row partial
    # accumulators keep the FMA critical path short.
    parts = []
    for dh in range(3):
        acc = cw_ref[dh * 3] * x_ref[dh:dh + H, :, 0:W]
        acc = acc + cw_ref[dh * 3 + 1] * x_ref[dh:dh + H, :, 1:1 + W]
        acc = acc + cw_ref[dh * 3 + 2] * x_ref[dh:dh + H, :, 2:2 + W]
        parts.append(acc)
    # bias map (rows 40..43) carries conv bias, both BN shifts and the
    # zero-pad border corrections; broadcast along the batch (sublane) axis.
    bias = p_ref[40:44, 0:W]                                    # (H, W)
    conv = (parts[0] + parts[1]) + (parts[2] + bias[:, None, :])
    act = jnp.maximum(conv, 0.0)                                # ReLU, (H, N, W)

    # MaxPool2d(2, 2): adjacent-column max, then row-pair max.  The stride-2
    # column selection + flatten are folded into the fc1 weight (zero columns
    # at odd positions), so `mw` keeps all 16 adjacent-pair maxima.
    mw = jnp.maximum(act[:, :, 0:W - 1], act[:, :, 1:W])        # (4, N, 16)
    row0 = jnp.maximum(mw[0], mw[1])                            # pooled row 0, (N, 16)
    row1 = jnp.maximum(mw[2], mw[3])                            # pooled row 1, (N, 16)
    pooled = jnp.concatenate([row0, row1], axis=1)              # (N, 32)

    # Parameter slab: rows 0..31 fused fc1 weight, rows 32..39 small params.
    fc1w = p_ref[0:32, 0:4]                                     # (32, 4)
    small = p_ref[32:40, 0:4]                                   # (8, 4)
    fc1b = small[0:1, :]
    bn1s = small[1:2, :]
    bn1h = small[2:3, :]
    fc2w = small[3:7, :]                                        # (4, 4) = W2^T
    fc2b = small[7:8, :]

    # Linear(16 -> 4): single MXU dot. Then eval-mode BatchNorm1d + ReLU.
    h1 = jnp.dot(pooled, fc1w, preferred_element_type=jnp.float32) + fc1b
    h1 = jnp.maximum(h1 * bn1s + bn1h, 0.0)                     # (N, 4)

    # Linear(4 -> 4) on the VPU (4x4 is not worth an MXU push/pop).
    logits = fc2b
    for k in range(4):
        logits = logits + h1[:, k:k + 1] * fc2w[k:k + 1, :]     # (N,1)*(1,4) -> (N,4)

    # Softmax(dim=1); reciprocal routed to the EUP.
    m = jnp.max(logits, axis=1, keepdims=True)
    e = jnp.exp(logits - m)
    out_ref[...] = e * pl.reciprocal(jnp.sum(e, axis=1, keepdims=True),
                                     approx=True)


def _fold_bn(g, b, rm, rv):
    scale = g / jnp.sqrt(rv + EPS)
    return scale, b - rm * scale


def prepare_params(params, input_size=(4, 17)):
    """One-time fold of module parameters into kernel-ready constants.

    Hoisted out of the per-call path: returns the BN-folded conv taps (SMEM)
    and the fused (44, 17) parameter slab (VMEM).  Call once per weight set.
    """
    H, W = input_size

    # ---- Fold BN2d(in) and BN2d(out) into the conv weights + a bias map ----
    sa, ha = _fold_bn(*params["bn_in"])        # BN on the input
    sb, hb = _fold_bn(*params["bn_conv"])      # BN after the conv
    cw = (params["conv_w"] * (sa * sb)).reshape(9)             # folded 3x3 taps

    # bias_map[h,w] = sb * (ha * conv3x3(interior_mask)[h,w] + conv_b) + hb
    # (PyTorch pads AFTER the first BN, so the pad border is exactly zero and
    #  the BN shift only contributes through the mask convolution.)
    ones_pad = jnp.pad(jnp.ones((H, W), jnp.float32), 1)
    border = sum(params["conv_w"][dh, dw] * ones_pad[dh:dh + H, dw:dw + W]
                 for dh in range(3) for dw in range(3))
    bias_map = sb * (ha * border + params["conv_b"]) + hb      # (H, W)

    # Fuse stride-2 column selection + flatten of the max-pool into fc1_w:
    #   fc1w[16*i + 2*j, o] = W1[o, i*8 + j], zeros at odd columns.
    W1 = params["fc1_w"]                                       # (4, 16)
    fc1w = jnp.zeros((2, 16, 4), jnp.float32)
    fc1w = fc1w.at[:, 0::2, :].set(jnp.transpose(W1.reshape(4, 2, 8), (1, 2, 0)))
    fc1w = fc1w.reshape(32, 4)

    s_fc, h_fc = _fold_bn(*params["bn_fc"])                    # (4,) each
    small = jnp.concatenate([
        jnp.stack([params["fc1_b"], s_fc, h_fc], axis=0),      # rows 32..34
        params["fc2_w"].T,                                     # rows 35..38
        params["fc2_b"].reshape(1, 4),                         # row  39
    ], axis=0)                                                 # (8, 4)

    pslab = jnp.zeros((44, W), jnp.float32)
    pslab = pslab.at[0:32, 0:4].set(fc1w)
    pslab = pslab.at[32:40, 0:4].set(small)
    pslab = pslab.at[40:44, 0:W].set(bias_map)
    return cw, pslab


def init_params(key):
    """Deterministic synthetic parameters matching the module's shapes."""
    ks = jax.random.split(key, 8)
    p = {}
    p["conv_w"] = 0.3 * jax.random.normal(ks[0], (3, 3), jnp.float32)   # (1,1,3,3) squeezed
    p["conv_b"] = jnp.float32(0.05)
    p["fc1_w"] = 0.25 * jax.random.normal(ks[1], (4, 16), jnp.float32)  # Linear(16,4).weight
    p["fc1_b"] = 0.1 * jax.random.normal(ks[2], (4,), jnp.float32)
    p["fc2_w"] = 0.5 * jax.random.normal(ks[3], (4, 4), jnp.float32)    # Linear(4,4).weight
    p["fc2_b"] = 0.1 * jax.random.normal(ks[4], (4,), jnp.float32)
    # (gamma, beta, running_mean, running_var) — eval-mode BatchNorm statistics.
    p["bn_in"] = (jnp.float32(1.1), jnp.float32(0.05),
                  jnp.float32(0.02), jnp.float32(0.8))
    p["bn_conv"] = (jnp.float32(0.9), jnp.float32(-0.03),
                    jnp.float32(0.01), jnp.float32(1.2))
    p["bn_fc"] = (1.0 + 0.1 * jax.random.normal(ks[5], (4,), jnp.float32),
                  0.1 * jax.random.normal(ks[6], (4,), jnp.float32),
                  0.1 * jax.random.normal(ks[7], (4,), jnp.float32),
                  jnp.full((4,), 0.9, jnp.float32))
    return p


@jax.jit
def cnn_forward(x_nchw, cw, pslab):
    """Per-call path: only transpose + zero-pad + one pallas_call."""
    N, C, H, W = x_nchw.shape
    assert C == 1 and H == 4 and W == 17

    # (N,1,H,W) -> (H,N,W) -> zero-pad to (H+2, N, W+2).
    xt = jnp.transpose(x_nchw[:, 0, :, :], (1, 0, 2)).astype(jnp.float32)
    xp = jnp.pad(xt, ((1, 1), (0, 0), (1, 1)))

    # TODO(synk): if called repeatedly / batch grows, add a leading "parallel"
    # batch-block grid axis (v7x dual TC) and a lane-dense output layout.
    return pl.pallas_call(
        _cnn_kernel,
        grid=(1,),
        in_specs=[
            pl.BlockSpec(memory_space=pltpu.MemorySpace.SMEM),        # conv taps (9,)
            pl.BlockSpec((H + 2, N, W + 2), lambda i: (0, 0, 0)),     # padded input
            pl.BlockSpec((44, W), lambda i: (0, 0)),                  # param slab
        ],
        out_specs=pl.BlockSpec((N, 4), lambda i: (0, 0)),
        out_shape=jax.ShapeDtypeStruct((N, 4), jnp.float32),
        compiler_params=pltpu.CompilerParams(dimension_semantics=("arbitrary",)),
    )(cw, xp, pslab)


def cnn_reference(x_nchw, params):
    """Pure-JAX reference of the same forward pass (eval-mode BatchNorm)."""
    g, b, rm, rv = params["bn_in"]
    x = (x_nchw - rm) / jnp.sqrt(rv + EPS) * g + b
    w = params["conv_w"].reshape(1, 1, 3, 3)
    y = lax.conv_general_dilated(
        x, w, window_strides=(1, 1), padding=((1, 1), (1, 1)),
        dimension_numbers=("NCHW", "OIHW", "NCHW"),
        precision=lax.Precision.HIGHEST) + params["conv_b"]
    g, b, rm, rv = params["bn_conv"]
    y = jnp.maximum((y - rm) / jnp.sqrt(rv + EPS) * g + b, 0.0)
    y = lax.reduce_window(y, -jnp.inf, lax.max,
                          window_dimensions=(1, 1, 2, 2),
                          window_strides=(1, 1, 2, 2), padding="VALID")
    f = y.reshape(y.shape[0], -1)                            # (N, 16)
    h = jnp.dot(f, params["fc1_w"].T,
                precision=lax.Precision.HIGHEST) + params["fc1_b"]
    g, b, rm, rv = params["bn_fc"]
    h = jnp.maximum((h - rm) / jnp.sqrt(rv + EPS) * g + b, 0.0)
    logits = jnp.dot(h, params["fc2_w"].T,
                     precision=lax.Precision.HIGHEST) + params["fc2_b"]
    return jax.nn.softmax(logits, axis=1)


if __name__ == "__main__":
    key = jax.random.PRNGKey(0)
    kx, kp = jax.random.split(key)
    # NCHW input matching CNN() defaults: in_channels=1, input_size=(4, 17).
    x = jax.random.normal(kx, (8, 1, 4, 17), jnp.float32)
    params = init_params(kp)

    # One-time parameter fold (hoisted out of the per-call path).
    cw, pslab = prepare_params(params)

    out = jax.block_until_ready(cnn_forward(x, cw, pslab))
    ref = jax.block_until_ready(cnn_reference(x, params))

    assert out.shape == (8, 4), out.shape
    if not jnp.allclose(out, ref, atol=5e-4, rtol=2e-3):
        raise AssertionError(
            f"kernel/reference mismatch, max abs err = {jnp.max(jnp.abs(out - ref))}")
    print("KERNEL_OK")
</pallas_src>

<mosaic_0001>
module attributes {stable_mosaic.version = 11 : i64} {
  func.func @_cnn_kernel(%arg0: i32, %arg1: memref<9xf32, #tpu.memory_space<smem>>, %arg2: memref<6x8x19xf32, #tpu.memory_space<vmem>>, %arg3: memref<44x17xf32, #tpu.memory_space<vmem>>, %arg4: memref<8x4xf32, #tpu.memory_space<vmem>>) attributes {dimension_semantics = [#tpu.dimension_semantics<arbitrary>], iteration_bounds = array<i64: 1>, scalar_prefetch = 0 : i64, scratch_operands = 0 : i64, tpu.core_type = #tpu.core_type<tc>, window_params = [{transform_indices = @transform_0, window_bounds = array<i64: 9>}, {pipeline_mode = #tpu.pipeline_mode<synchronous>, transform_indices = @transform_1, window_bounds = array<i64: 6, 8, 19>}, {pipeline_mode = #tpu.pipeline_mode<synchronous>, transform_indices = @transform_2, window_bounds = array<i64: 44, 17>}, {pipeline_mode = #tpu.pipeline_mode<synchronous>, transform_indices = @transform_3, window_bounds = array<i64: 8, 4>}]} {
    %c0 = arith.constant 0 : index
    %0 = memref.load %arg1[%c0] : memref<9xf32, #tpu.memory_space<smem>>
    %c0_0 = arith.constant 0 : index
    %c0_1 = arith.constant 0 : index
    %c0_2 = arith.constant 0 : index
    %1 = vector.load %arg2[%c0_0, %c0_1, %c0_2] : memref<6x8x19xf32, #tpu.memory_space<vmem>>, vector<4x8x17xf32>
    %2 = vector.broadcast %0 : f32 to vector<4x8x17xf32>
    %3 = arith.mulf %2, %1 : vector<4x8x17xf32>
    %c1 = arith.constant 1 : index
    %4 = memref.load %arg1[%c1] : memref<9xf32, #tpu.memory_space<smem>>
    %c0_3 = arith.constant 0 : index
    %c0_4 = arith.constant 0 : index
    %c1_5 = arith.constant 1 : index
    %5 = vector.load %arg2[%c0_3, %c0_4, %c1_5] : memref<6x8x19xf32, #tpu.memory_space<vmem>>, vector<4x8x17xf32>
    %6 = vector.broadcast %4 : f32 to vector<4x8x17xf32>
    %7 = arith.mulf %6, %5 : vector<4x8x17xf32>
    %8 = arith.addf %3, %7 : vector<4x8x17xf32>
    %c2 = arith.constant 2 : index
    %9 = memref.load %arg1[%c2] : memref<9xf32, #tpu.memory_space<smem>>
    %c0_6 = arith.constant 0 : index
    %c0_7 = arith.constant 0 : index
    %c2_8 = arith.constant 2 : index
    %10 = vector.load %arg2[%c0_6, %c0_7, %c2_8] : memref<6x8x19xf32, #tpu.memory_space<vmem>>, vector<4x8x17xf32>
    %11 = vector.broadcast %9 : f32 to vector<4x8x17xf32>
    %12 = arith.mulf %11, %10 : vector<4x8x17xf32>
    %13 = arith.addf %8, %12 : vector<4x8x17xf32>
    %c3 = arith.constant 3 : index
    %14 = memref.load %arg1[%c3] : memref<9xf32, #tpu.memory_space<smem>>
    %c1_9 = arith.constant 1 : index
    %c0_10 = arith.constant 0 : index
    %c0_11 = arith.constant 0 : index
    %15 = vector.load %arg2[%c1_9, %c0_10, %c0_11] : memref<6x8x19xf32, #tpu.memory_space<vmem>>, vector<4x8x17xf32>
    %16 = vector.broadcast %14 : f32 to vector<4x8x17xf32>
    %17 = arith.mulf %16, %15 : vector<4x8x17xf32>
    %c4 = arith.constant 4 : index
    %18 = memref.load %arg1[%c4] : memref<9xf32, #tpu.memory_space<smem>>
    %c1_12 = arith.constant 1 : index
    %c0_13 = arith.constant 0 : index
    %c1_14 = arith.constant 1 : index
    %19 = vector.load %arg2[%c1_12, %c0_13, %c1_14] : memref<6x8x19xf32, #tpu.memory_space<vmem>>, vector<4x8x17xf32>
    %20 = vector.broadcast %18 : f32 to vector<4x8x17xf32>
    %21 = arith.mulf %20, %19 : vector<4x8x17xf32>
    %22 = arith.addf %17, %21 : vector<4x8x17xf32>
    %c5 = arith.constant 5 : index
    %23 = memref.load %arg1[%c5] : memref<9xf32, #tpu.memory_space<smem>>
    %c1_15 = arith.constant 1 : index
    %c0_16 = arith.constant 0 : index
    %c2_17 = arith.constant 2 : index
    %24 = vector.load %arg2[%c1_15, %c0_16, %c2_17] : memref<6x8x19xf32, #tpu.memory_space<vmem>>, vector<4x8x17xf32>
    %25 = vector.broadcast %23 : f32 to vector<4x8x17xf32>
    %26 = arith.mulf %25, %24 : vector<4x8x17xf32>
    %27 = arith.addf %22, %26 : vector<4x8x17xf32>
    %c6 = arith.constant 6 : index
    %28 = memref.load %arg1[%c6] : memref<9xf32, #tpu.memory_space<smem>>
    %c2_18 = arith.constant 2 : index
    %c0_19 = arith.constant 0 : index
    %c0_20 = arith.constant 0 : index
    %29 = vector.load %arg2[%c2_18, %c0_19, %c0_20] : memref<6x8x19xf32, #tpu.memory_space<vmem>>, vector<4x8x17xf32>
    %30 = vector.broadcast %28 : f32 to vector<4x8x17xf32>
    %31 = arith.mulf %30, %29 : vector<4x8x17xf32>
    %c7 = arith.constant 7 : index
    %32 = memref.load %arg1[%c7] : memref<9xf32, #tpu.memory_space<smem>>
    %c2_21 = arith.constant 2 : index
    %c0_22 = arith.constant 0 : index
    %c1_23 = arith.constant 1 : index
    %33 = vector.load %arg2[%c2_21, %c0_22, %c1_23] : memref<6x8x19xf32, #tpu.memory_space<vmem>>, vector<4x8x17xf32>
    %34 = vector.broadcast %32 : f32 to vector<4x8x17xf32>
    %35 = arith.mulf %34, %33 : vector<4x8x17xf32>
    %36 = arith.addf %31, %35 : vector<4x8x17xf32>
    %c8 = arith.constant 8 : index
    %37 = memref.load %arg1[%c8] : memref<9xf32, #tpu.memory_space<smem>>
    %c2_24 = arith.constant 2 : index
    %c0_25 = arith.constant 0 : index
    %c2_26 = arith.constant 2 : index
    %38 = vector.load %arg2[%c2_24, %c0_25, %c2_26] : memref<6x8x19xf32, #tpu.memory_space<vmem>>, vector<4x8x17xf32>
    %39 = vector.broadcast %37 : f32 to vector<4x8x17xf32>
    %40 = arith.mulf %39, %38 : vector<4x8x17xf32>
    %41 = arith.addf %36, %40 : vector<4x8x17xf32>
    %c40 = arith.constant 40 : index
    %c0_27 = arith.constant 0 : index
    %42 = vector.load %arg3[%c40, %c0_27] : memref<44x17xf32, #tpu.memory_space<vmem>>, vector<4x17xf32>
    %43 = arith.addf %13, %27 : vector<4x8x17xf32>
    %44 = vector.shape_cast %42 : vector<4x17xf32> to vector<4x1x17xf32>
    %45 = vector.broadcast %44 : vector<4x1x17xf32> to vector<4x8x17xf32>
    %46 = arith.addf %41, %45 : vector<4x8x17xf32>
    %47 = arith.addf %43, %46 : vector<4x8x17xf32>
    %cst = arith.constant 0.000000e+00 : f32
    %48 = vector.broadcast %cst : f32 to vector<4x8x17xf32>
    %49 = arith.maximumf %47, %48 : vector<4x8x17xf32>
    %50 = vector.extract_strided_slice %49 {offsets = [0, 0, 0], sizes = [4, 8, 16], strides = [1, 1, 1]} : vector<4x8x17xf32> to vector<4x8x16xf32>
    %51 = vector.extract_strided_slice %49 {offsets = [0, 0, 1], sizes = [4, 8, 16], strides = [1, 1, 1]} : vector<4x8x17xf32> to vector<4x8x16xf32>
    %52 = arith.maximumf %50, %51 : vector<4x8x16xf32>
    %53 = vector.extract_strided_slice %52 {offsets = [0, 0, 0], sizes = [1, 8, 16], strides = [1, 1, 1]} : vector<4x8x16xf32> to vector<1x8x16xf32>
    %54 = vector.shape_cast %53 : vector<1x8x16xf32> to vector<8x16xf32>
    %55 = vector.extract_strided_slice %52 {offsets = [1, 0, 0], sizes = [1, 8, 16], strides = [1, 1, 1]} : vector<4x8x16xf32> to vector<1x8x16xf32>
    %56 = vector.shape_cast %55 : vector<1x8x16xf32> to vector<8x16xf32>
    %57 = arith.maximumf %54, %56 : vector<8x16xf32>
    %58 = vector.extract_strided_slice %52 {offsets = [2, 0, 0], sizes = [1, 8, 16], strides = [1, 1, 1]} : vector<4x8x16xf32> to vector<1x8x16xf32>
    %59 = vector.shape_cast %58 : vector<1x8x16xf32> to vector<8x16xf32>
    %60 = vector.extract_strided_slice %52 {offsets = [3, 0, 0], sizes = [1, 8, 16], strides = [1, 1, 1]} : vector<4x8x16xf32> to vector<1x8x16xf32>
    %61 = vector.shape_cast %60 : vector<1x8x16xf32> to vector<8x16xf32>
    %62 = arith.maximumf %59, %61 : vector<8x16xf32>
    %63 = tpu.concatenate %57, %62 in 1 : vector<8x16xf32>, vector<8x16xf32> -> vector<8x32xf32>
    %c0_28 = arith.constant 0 : index
    %c0_29 = arith.constant 0 : index
    %64 = vector.load %arg3[%c0_28, %c0_29] : memref<44x17xf32, #tpu.memory_space<vmem>>, vector<32x4xf32>
    %c32 = arith.constant 32 : index
    %c0_30 = arith.constant 0 : index
    %65 = vector.load %arg3[%c32, %c0_30] : memref<44x17xf32, #tpu.memory_space<vmem>>, vector<8x4xf32>
    %66 = vector.extract_strided_slice %65 {offsets = [0, 0], sizes = [1, 4], strides = [1, 1]} : vector<8x4xf32> to vector<1x4xf32>
    %67 = vector.extract_strided_slice %65 {offsets = [1, 0], sizes = [1, 4], strides = [1, 1]} : vector<8x4xf32> to vector<1x4xf32>
    %68 = vector.extract_strided_slice %65 {offsets = [2, 0], sizes = [1, 4], strides = [1, 1]} : vector<8x4xf32> to vector<1x4xf32>
    %69 = vector.extract_strided_slice %65 {offsets = [3, 0], sizes = [4, 4], strides = [1, 1]} : vector<8x4xf32> to vector<4x4xf32>
    %70 = vector.extract_strided_slice %65 {offsets = [7, 0], sizes = [1, 4], strides = [1, 1]} : vector<8x4xf32> to vector<1x4xf32>
    %cst_31 = arith.constant dense<0.000000e+00> : vector<8x4xf32>
    %71 = tpu.matmul %63, %64, %cst_31 {dimension_numbers = #tpu.dot_dimension_numbers<[1], [0], [0], [1], [0, 0, 1, 1], [], []>} : vector<8x32xf32>, vector<32x4xf32>, vector<8x4xf32> -> vector<8x4xf32>
    %72 = vector.broadcast %66 : vector<1x4xf32> to vector<8x4xf32>
    %73 = arith.addf %71, %72 : vector<8x4xf32>
    %74 = vector.broadcast %67 : vector<1x4xf32> to vector<8x4xf32>
    %75 = arith.mulf %73, %74 : vector<8x4xf32>
    %76 = vector.broadcast %68 : vector<1x4xf32> to vector<8x4xf32>
    %77 = arith.addf %75, %76 : vector<8x4xf32>
    %cst_32 = arith.constant 0.000000e+00 : f32
    %78 = vector.broadcast %cst_32 : f32 to vector<8x4xf32>
    %79 = arith.maximumf %77, %78 : vector<8x4xf32>
    %80 = vector.extract_strided_slice %79 {offsets = [0, 0], sizes = [8, 1], strides = [1, 1]} : vector<8x4xf32> to vector<8x1xf32>
    %81 = vector.extract_strided_slice %69 {offsets = [0, 0], sizes = [1, 4], strides = [1, 1]} : vector<4x4xf32> to vector<1x4xf32>
    %82 = vector.broadcast %80 : vector<8x1xf32> to vector<8x4xf32>
    %83 = vector.broadcast %81 : vector<1x4xf32> to vector<8x4xf32>
    %84 = arith.mulf %82, %83 : vector<8x4xf32>
    %85 = vector.broadcast %70 : vector<1x4xf32> to vector<8x4xf32>
    %86 = arith.addf %85, %84 : vector<8x4xf32>
    %87 = vector.extract_strided_slice %79 {offsets = [0, 1], sizes = [8, 1], strides = [1, 1]} : vector<8x4xf32> to vector<8x1xf32>
    %88 = vector.extract_strided_slice %69 {offsets = [1, 0], sizes = [1, 4], strides = [1, 1]} : vector<4x4xf32> to vector<1x4xf32>
    %89 = vector.broadcast %87 : vector<8x1xf32> to vector<8x4xf32>
    %90 = vector.broadcast %88 : vector<1x4xf32> to vector<8x4xf32>
    %91 = arith.mulf %89, %90 : vector<8x4xf32>
    %92 = arith.addf %86, %91 : vector<8x4xf32>
    %93 = vector.extract_strided_slice %79 {offsets = [0, 2], sizes = [8, 1], strides = [1, 1]} : vector<8x4xf32> to vector<8x1xf32>
    %94 = vector.extract_strided_slice %69 {offsets = [2, 0], sizes = [1, 4], strides = [1, 1]} : vector<4x4xf32> to vector<1x4xf32>
    %95 = vector.broadcast %93 : vector<8x1xf32> to vector<8x4xf32>
    %96 = vector.broadcast %94 : vector<1x4xf32> to vector<8x4xf32>
    %97 = arith.mulf %95, %96 : vector<8x4xf32>
    %98 = arith.addf %92, %97 : vector<8x4xf32>
    %99 = vector.extract_strided_slice %79 {offsets = [0, 3], sizes = [8, 1], strides = [1, 1]} : vector<8x4xf32> to vector<8x1xf32>
    %100 = vector.extract_strided_slice %69 {offsets = [3, 0], sizes = [1, 4], strides = [1, 1]} : vector<4x4xf32> to vector<1x4xf32>
    %101 = vector.broadcast %99 : vector<8x1xf32> to vector<8x4xf32>
    %102 = vector.broadcast %100 : vector<1x4xf32> to vector<8x4xf32>
    %103 = arith.mulf %101, %102 : vector<8x4xf32>
    %104 = arith.addf %98, %103 : vector<8x4xf32>
    %cst_33 = arith.constant dense<0xFF800000> : vector<8xf32>
    %105 = vector.multi_reduction <maximumf>, %104, %cst_33 [1] : vector<8x4xf32> to vector<8xf32>
    %106 = vector.shape_cast %105 : vector<8xf32> to vector<8x1xf32>
    %107 = vector.broadcast %106 : vector<8x1xf32> to vector<8x4xf32>
    %108 = arith.subf %104, %107 : vector<8x4xf32>
    %109 = math.exp %108 : vector<8x4xf32>
    %cst_34 = arith.constant dense<0.000000e+00> : vector<8xf32>
    %110 = vector.multi_reduction <add>, %109, %cst_34 [1] : vector<8x4xf32> to vector<8xf32>
    %111 = vector.shape_cast %110 : vector<8xf32> to vector<8x1xf32>
    %112 = tpu.reciprocal %111 {approx = true} : vector<8x1xf32> -> vector<8x1xf32>
    %113 = vector.broadcast %112 : vector<8x1xf32> to vector<8x4xf32>
    %114 = arith.mulf %109, %113 : vector<8x4xf32>
    %c0_35 = arith.constant 0 : index
    %c0_36 = arith.constant 0 : index
    %115 = vector.load %arg4[%c0_35, %c0_36] : memref<8x4xf32, #tpu.memory_space<vmem>>, vector<8x4xf32>
    tpu.vector_store %arg4[%c0_35, %c0_36], %114 {strides = array<i32>} : memref<8x4xf32, #tpu.memory_space<vmem>>, vector<8x4xf32>,
    return
  }
  func.func @transform_0(%arg0: i32) -> i32 {
    %c0_i32 = arith.constant 0 : i32
    %c0_i32_0 = arith.constant 0 : i32
    return %c0_i32 : i32
  }
  func.func @transform_1(%arg0: i32) -> (i32, i32, i32) {
    %c0_i32 = arith.constant 0 : i32
    %c0_i32_0 = arith.constant 0 : i32
    %c0_i32_1 = arith.constant 0 : i32
    %c0_i32_2 = arith.constant 0 : i32
    return %c0_i32, %c0_i32_0, %c0_i32_1 : i32, i32, i32
  }
  func.func @transform_2(%arg0: i32) -> (i32, i32) {
    %c0_i32 = arith.constant 0 : i32
    %c0_i32_0 = arith.constant 0 : i32
    %c0_i32_1 = arith.constant 0 : i32
    return %c0_i32, %c0_i32_0 : i32, i32
  }
  func.func @transform_3(%arg0: i32) -> (i32, i32) {
    %c0_i32 = arith.constant 0 : i32
    %c0_i32_0 = arith.constant 0 : i32
    %c0_i32_1 = arith.constant 0 : i32
    return %c0_i32, %c0_i32_0 : i32, i32
  }
}

</mosaic_0001>

<llo_original>
// kernel: cnn_forward.1
$region0: #{cnn_forward.1}
  #allocation0 [shape = 'u32[]', space=smem, size = 0x4, offset = 0x4, fixed_abs, tag = 'smem constant byte address 0x4 - core index']
  #allocation1 [shape = 'u32[144,128]{1,0:T(1,128)}', space=vmem, size = 0x12000, scoped, tag = 'internal scratch']
  %s0 = inlined_call_operand.vmem [shape: f32[9], index: 0, kind: input, shape index: {}]
  %s1 = inlined_call_operand.vmem [shape: f32[6,8,19], index: 1, kind: input, shape index: {}]
  %s2 = inlined_call_operand.vmem [shape: f32[44,17], index: 2, kind: input, shape index: {}]
  %s3 = inlined_call_operand.vmem [shape: f32[8,4], index: 3, kind: output, shape index: {}]
  %s4 = sld [smem:[#allocation0]]
  $region26: #{cnn_forward.1} parent=0
    _
  %s6 = ssub.s32 1, %s4
  %s7 = scalar_select 0, %s6, %s4
  $region1: #{cnn_forward.1} parent=0
    #allocation2 [shape = 'u8[512]{0}', space=smem, size = 0x200, scoped, tag = 'input window, operand 0, single buffered']
    #allocation3 [shape = 's32[1]{0}', space=sflag, size = 0x4, scoped, tag = 'scoped memory for cnn_forward.1']
    %8 = vsyncpa [#allocation3], 0
    // Predicated region
    $region2: #{cnn_forward.1} parent=1 // pred_check
      _
    $region3: #{cnn_forward.1} parent=1 // pred_check_branch
      %10 = sbr.rel (0) target = $region5
    $region4: #{cnn_forward.1} parent=1 // pred_region
      %s12 = ssub.s32 16, 16
      %13 = vsyncadd [#allocation3], %s12
      %s15 = sshll.u32 %s0, 4
      %s16 = int_to_ptr.vmem [resolvable:$true] %s15
      %18 = dma.vmem_to_smem %s16, 16, [#allocation2], [#allocation3]
    $region5: #{cnn_forward.1} parent=1 // pred_fallthru
      _
    // Predicated region
    $region6: #{cnn_forward.1} parent=1 // pred_check
      _
    $region7: #{cnn_forward.1} parent=1 // pred_check_branch
      %20 = sbr.rel (0) target = $region9
    $region8: #{cnn_forward.1} parent=1 // pred_region
      _
    $region9: #{cnn_forward.1} parent=1 // pred_fallthru
      _
    // Predicated region
    $region10: #{cnn_forward.1} parent=1 // pred_check
      _
    $region11: #{cnn_forward.1} parent=1 // pred_check_branch
      %22 = sbr.rel (0) target = $region13
    $region12: #{cnn_forward.1} parent=1 // pred_region
      _
    $region13: #{cnn_forward.1} parent=1 // pred_fallthru
      _
    // Predicated region
    $region14: #{cnn_forward.1} parent=1 // pred_check
      _
    $region15: #{cnn_forward.1} parent=1 // pred_check_branch
      %24 = sbr.rel (0) target = $region17
    $region16: #{cnn_forward.1} parent=1 // pred_region
      %25 = dma.done [#allocation3], 16
    $region17: #{cnn_forward.1} parent=1 // pred_fallthru
      _
    %26 = sfence
    %s27 = sld [smem:[#allocation2]]
    %v28 = vld [vmem:[%s1] sm:$0xff]
    %v29 = vld [vmem:[%s1 + $0x8] sm:$0xff]
    %v30 = vld [vmem:[%s1 + $0x10] sm:$0xff]
    %v31 = vld [vmem:[%s1 + $0x18] sm:$0xff]
    %v32 = vstv %s27
    %v33 = vmul.f32 %v32, %v28
    %v34 = vmul.f32 %v32, %v29
    %v35 = vmul.f32 %v32, %v30
    %v36 = vmul.f32 %v32, %v31
    %s37 = sld [smem:[#allocation2 + $0x1]]
    %v38 = vstv %s37
    %v39 = vmul.f32 %v38, %v28
    %v40 = vmul.f32 %v38, %v29
    %v41 = vmul.f32 %v38, %v30
    %v42 = vmul.f32 %v38, %v31
    %47 = vrot.lane.b32.xlu0 %v39, 127
    %v48 = vpop.permute.xlu0 %47
    %49 = vrot.lane.b32.xlu0 %v40, 127
    %v50 = vpop.permute.xlu0 %49
    %51 = vrot.lane.b32.xlu0 %v41, 127
    %v52 = vpop.permute.xlu0 %51
    %53 = vrot.lane.b32.xlu0 %v42, 127
    %v54 = vpop.permute.xlu0 %53
    %v59 = vadd.f32 %v33, %v48
    %v60 = vadd.f32 %v34, %v50
    %v61 = vadd.f32 %v35, %v52
    %v62 = vadd.f32 %v36, %v54
    %s63 = sld [smem:[#allocation2 + $0x2]]
    %v64 = vstv %s63
    %v65 = vmul.f32 %v64, %v28
    %v66 = vmul.f32 %v64, %v29
    %v67 = vmul.f32 %v64, %v30
    %v68 = vmul.f32 %v64, %v31
    %73 = vrot.lane.b32.xlu0 %v65, 126
    %v74 = vpop.permute.xlu0 %73
    %75 = vrot.lane.b32.xlu0 %v66, 126
    %v76 = vpop.permute.xlu0 %75
    %77 = vrot.lane.b32.xlu0 %v67, 126
    %v78 = vpop.permute.xlu0 %77
    %79 = vrot.lane.b32.xlu0 %v68, 126
    %v80 = vpop.permute.xlu0 %79
    %v85 = vadd.f32 %v59, %v74
    %v86 = vadd.f32 %v60, %v76
    %v87 = vadd.f32 %v61, %v78
    %v88 = vadd.f32 %v62, %v80
    %s89 = sld [smem:[#allocation2 + $0x3]]
    %s90 = scalar_lea.vmem %s1, 8
    %v91 = vld [vmem:[%s90] sm:$0xff]
    %v92 = vld [vmem:[%s90 + $0x8] sm:$0xff]
    %v93 = vld [vmem:[%s90 + $0x10] sm:$0xff]
    %v94 = vld [vmem:[%s90 + $0x18] sm:$0xff]
    %v95 = vstv %s89
    %v96 = vmul.f32 %v95, %v91
    %v97 = vmul.f32 %v95, %v92
    %v98 = vmul.f32 %v95, %v93
    %v99 = vmul.f32 %v95, %v94
    %s100 = sld [smem:[#allocation2 + $0x4]]
    %v101 = vstv %s100
    %v102 = vmul.f32 %v101, %v91
    %v103 = vmul.f32 %v101, %v92
    %v104 = vmul.f32 %v101, %v93
    %v105 = vmul.f32 %v101, %v94
    %110 = vrot.lane.b32.xlu0 %v102, 127
    %v111 = vpop.permute.xlu0 %110
    %112 = vrot.lane.b32.xlu0 %v103, 127
    %v113 = vpop.permute.xlu0 %112
    %114 = vrot.lane.b32.xlu0 %v104, 127
    %v115 = vpop.permute.xlu0 %114
    %116 = vrot.lane.b32.xlu0 %v105, 127
    %v117 = vpop.permute.xlu0 %116
    %v122 = vadd.f32 %v96, %v111
    %v123 = vadd.f32 %v97, %v113
    %v124 = vadd.f32 %v98, %v115
    %v125 = vadd.f32 %v99, %v117
    %s126 = sld [smem:[#allocation2 + $0x5]]
    %v127 = vstv %s126
    %v128 = vmul.f32 %v127, %v91
    %v129 = vmul.f32 %v127, %v92
    %v130 = vmul.f32 %v127, %v93
    %v131 = vmul.f32 %v127, %v94
    %136 = vrot.lane.b32.xlu0 %v128, 126
    %v137 = vpop.permute.xlu0 %136
    %138 = vrot.lane.b32.xlu0 %v129, 126
    %v139 = vpop.permute.xlu0 %138
    %140 = vrot.lane.b32.xlu0 %v130, 126
    %v141 = vpop.permute.xlu0 %140
    %142 = vrot.lane.b32.xlu0 %v131, 126
    %v143 = vpop.permute.xlu0 %142
    %v148 = vadd.f32 %v122, %v137
    %v149 = vadd.f32 %v123, %v139
    %v150 = vadd.f32 %v124, %v141
    %v151 = vadd.f32 %v125, %v143
    %s152 = sld [smem:[#allocation2 + $0x6]]
    %s153 = scalar_lea.vmem %s1, 16
    %v154 = vld [vmem:[%s153] sm:$0xff]
    %v155 = vld [vmem:[%s153 + $0x8] sm:$0xff]
    %v156 = vld [vmem:[%s153 + $0x10] sm:$0xff]
    %v157 = vld [vmem:[%s153 + $0x18] sm:$0xff]
    %v158 = vstv %s152
    %v159 = vmul.f32 %v158, %v154
    %v160 = vmul.f32 %v158, %v155
    %v161 = vmul.f32 %v158, %v156
    %v162 = vmul.f32 %v158, %v157
    %s163 = sld [smem:[#allocation2 + $0x7]]
    %v164 = vstv %s163
    %v165 = vmul.f32 %v164, %v154
    %v166 = vmul.f32 %v164, %v155
    %v167 = vmul.f32 %v164, %v156
    %v168 = vmul.f32 %v164, %v157
    %173 = vrot.lane.b32.xlu0 %v165, 127
    %v174 = vpop.permute.xlu0 %173
    %175 = vrot.lane.b32.xlu0 %v166, 127
    %v176 = vpop.permute.xlu0 %175
    %177 = vrot.lane.b32.xlu0 %v167, 127
    %v178 = vpop.permute.xlu0 %177
    %179 = vrot.lane.b32.xlu0 %v168, 127
    %v180 = vpop.permute.xlu0 %179
    %v185 = vadd.f32 %v159, %v174
    %v186 = vadd.f32 %v160, %v176
    %v187 = vadd.f32 %v161, %v178
    %v188 = vadd.f32 %v162, %v180
    %s189 = sld [smem:[#allocation2 + $0x8]]
    %v190 = vstv %s189
    %v191 = vmul.f32 %v190, %v154
    %v192 = vmul.f32 %v190, %v155
    %v193 = vmul.f32 %v190, %v156
    %v194 = vmul.f32 %v190, %v157
    %199 = vrot.lane.b32.xlu0 %v191, 126
    %v200 = vpop.permute.xlu0 %199
    %201 = vrot.lane.b32.xlu0 %v192, 126
    %v202 = vpop.permute.xlu0 %201
    %203 = vrot.lane.b32.xlu0 %v193, 126
    %v204 = vpop.permute.xlu0 %203
    %205 = vrot.lane.b32.xlu0 %v194, 126
    %v206 = vpop.permute.xlu0 %205
    %v211 = vadd.f32 %v185, %v200
    %v212 = vadd.f32 %v186, %v202
    %v213 = vadd.f32 %v187, %v204
    %v214 = vadd.f32 %v188, %v206
    %v215 = vld [vmem:[%s2 + $0x28] sm:$0xf]
    %v216 = vadd.f32 %v85, %v148
    %v217 = vadd.f32 %v86, %v149
    %v218 = vadd.f32 %v87, %v150
    %v219 = vadd.f32 %v88, %v151
    %v222 = vunpack.c.l.s4 1966171168
    %v223 = vunpack.c.0.s8 %v222
    %v224 = vlaneseq
    %v225 = vshrl.u32 %v224, 7
    %v226 = vsub.s32 %v223, %v225
    %v227 = vrot.slane %v215, %v226
    %v228 = vcombine.high %v227, %v227
    %v230 = vunpack.c.l.s4 1966171168
    %v231 = vunpack.c.0.s8 %v230
    %v232 = vlaneseq
    %v233 = vshrl.u32 %v232, 7
    %v234 = vsub.s32 %v231, %v233
    %v235 = vrot.slane %v227, %v234
    %v237 = vunpack.c.l.s4 1966171168
    %v238 = vunpack.c.0.s8 %v237
    %v239 = vlaneseq
    %v240 = vshrl.u32 %v239, 7
    %v241 = vsub.s32 %v238, %v240
    %v242 = vrot.slane %v228, %v241
    %v243 = vcombine.high %v235, %v235
    %v244 = vcombine.high %v242, %v242
    %v245 = vlaneseq
    %v246 = vshrl.u32 %v245, 7
    %v247 = vsub.s32 0, %v246
    %v248 = vrot.slane %v235, %v247
    %v249 = vlaneseq
    %v250 = vshrl.u32 %v249, 7
    %v251 = vsub.s32 0, %v250
    %v252 = vrot.slane %v242, %v251
    %v253 = vlaneseq
    %v254 = vshrl.u32 %v253, 7
    %v255 = vsub.s32 0, %v254
    %v256 = vrot.slane %v243, %v255
    %v257 = vlaneseq
    %v258 = vshrl.u32 %v257, 7
    %v259 = vsub.s32 0, %v258
    %v260 = vrot.slane %v244, %v259
    %v265 = vadd.f32 %v211, %v248
    %v266 = vadd.f32 %v212, %v252
    %v267 = vadd.f32 %v213, %v256
    %v268 = vadd.f32 %v214, %v260
    %v269 = vadd.f32 %v216, %v265
    %v270 = vadd.f32 %v217, %v266
    %v271 = vadd.f32 %v218, %v267
    %v272 = vadd.f32 %v219, %v268
    %v273 = vmax.f32 %v269, 0.0
    %v274 = vmax.f32 %v270, 0.0
    %v275 = vmax.f32 %v271, 0.0
    %v276 = vmax.f32 %v272, 0.0
    %281 = vrot.lane.b32.xlu0 %v273, 127
    %v282 = vpop.permute.xlu0 %281
    %283 = vrot.lane.b32.xlu0 %v274, 127
    %v284 = vpop.permute.xlu0 %283
    %285 = vrot.lane.b32.xlu0 %v275, 127
    %v286 = vpop.permute.xlu0 %285
    %287 = vrot.lane.b32.xlu0 %v276, 127
    %v288 = vpop.permute.xlu0 %287
    %v293 = vmax.f32 %v273, %v282
    %v294 = vmax.f32 %v274, %v284
    %v295 = vmax.f32 %v275, %v286
    %v296 = vmax.f32 %v276, %v288
    %v297 = vmax.f32 %v293, %v294
    %v298 = vmax.f32 %v295, %v296
    %300 = vrot.lane.b32.xlu0 %v298, 16
    %v301 = vpop.permute.xlu0 %300
    %vm303 = vcmask 130048
    %v304 = vsel %vm303, %v297, %v301
    %v305 = vld [vmem:[%s2] sm:$0xff]
    %v306 = vld [vmem:[%s2 + $0x8] sm:$0xff]
    %v307 = vld [vmem:[%s2 + $0x10] sm:$0xff]
    %v308 = vld [vmem:[%s2 + $0x18] sm:$0xff]
    %v309 = vld [vmem:[%s2 + $0x20] sm:$0xff]
    %v310 = vlaneseq
    %v311 = vshrl.u32 %v310, 7
    %v312 = vsub.s32 0, %v311
    %v313 = vrot.slane %v309, %v312
    %vm314 = vcmask 261120
    %v316 = vsel %vm314, %v304, 0
    %318 = vmatprep.subr.mxu0 0.0
    %319 = vmatpush1.msra.mxu0 0.0
    %320 = vmatprep.subr.mxu0 0.0
    %321 = vmatpush1.msra.mxu0 0.0
    %322 = vmatprep.subr.mxu0 0.0
    %323 = vmatpush1.msra.mxu0 0.0
    %324 = vmatprep.subr.mxu0 0.0
    %325 = vmatpush1.msra.mxu0 0.0
    %326 = vmatprep.subr.mxu0 0.0
    %327 = vmatpush1.msra.mxu0 0.0
    %328 = vmatprep.subr.mxu0 0.0
    %329 = vmatpush1.msra.mxu0 0.0
    %330 = vmatprep.subr.mxu0 0.0
    %331 = vmatpush1.msra.mxu0 0.0
    %332 = vmatprep.subr.mxu0 0.0
    %333 = vmatpush1.msra.mxu0 0.0
    %334 = vmatprep.subr.mxu0 0.0
    %335 = vmatpush1.msra.mxu0 0.0
    %336 = vmatprep.subr.mxu0 0.0
    %337 = vmatpush1.msra.mxu0 0.0
    %338 = vmatprep.subr.mxu0 0.0
    %339 = vmatpush1.msra.mxu0 0.0
    %340 = vmatprep.subr.mxu0 0.0
    %341 = vmatpush1.msra.mxu0 0.0
    %342 = vmatprep.subr.mxu0 0.0
    %343 = vmatpush1.msra.mxu0 %v308
    %344 = vmatprep.subr.mxu0 0.0
    %345 = vmatpush1.msra.mxu0 %v307
    %346 = vmatprep.subr.mxu0 0.0
    %347 = vmatpush1.msra.mxu0 %v306
    %348 = vmatprep.subr.mxu0 0.0
    %349 = vmatpush1.msra.mxu0 %v305
    %350 = vmatprep.subr.mxu0 0.0
    %351 = vmatpush2.msra.mxu0 0.0
    %352 = vmatprep.subr.mxu0 0.0
    %353 = vmatpush2.msra.mxu0 0.0
    %354 = vmatprep.subr.mxu0 0.0
    %355 = vmatpush2.msra.mxu0 0.0
    %356 = vmatprep.subr.mxu0 0.0
    %357 = vmatpush2.msra.mxu0 0.0
    %358 = vmatprep.subr.mxu0 0.0
    %359 = vmatpush2.msra.mxu0 0.0
    %360 = vmatprep.subr.mxu0 0.0
    %361 = vmatpush2.msra.mxu0 0.0
    %362 = vmatprep.subr.mxu0 0.0
    %363 = vmatpush2.msra.mxu0 0.0
    %364 = vmatprep.subr.mxu0 0.0
    %365 = vmatpush2.msra.mxu0 0.0
    %366 = vmatprep.subr.mxu0 0.0
    %367 = vmatpush2.msra.mxu0 0.0
    %368 = vmatprep.subr.mxu0 0.0
    %369 = vmatpush2.msra.mxu0 0.0
    %370 = vmatprep.subr.mxu0 0.0
    %371 = vmatpush2.msra.mxu0 0.0
    %372 = vmatprep.subr.mxu0 0.0
    %373 = vmatpush2.msra.mxu0 0.0
    %374 = vmatprep.subr.mxu0 0.0
    %375 = vmatpush2.msra.mxu0 0.0
    %376 = vmatprep.subr.mxu0 0.0
    %377 = vmatpush2.msra.mxu0 0.0
    %378 = vmatprep.subr.mxu0 0.0
    %379 = vmatpush2.msra.mxu0 0.0
    %380 = vmatprep.subr.mxu0 0.0
    %381 = vmatpush2.msra.mxu0 0.0
    %382 = vmatprep.mubr.f32.mxu0 0.0
    %383 = vmatmul.mubr.f32.gmra.mxu0 %v316
    %v384 = vpop.f32.mrf.mxu0
    %v385 = vadd.f32 %v313, %v384
    %v386 = vpop.f32.mrf.mxu0
    %387 = vdwg.mxu0
    %v388 = vlaneseq
    %v389 = vshrl.u32 %v388, 7
    %v390 = vsub.s32 1, %v389
    %v391 = vrot.slane %v309, %v390
    %v392 = vmul.f32 %v385, %v391
    %v393 = vlaneseq
    %v394 = vshrl.u32 %v393, 7
    %v395 = vsub.s32 2, %v394
    %v396 = vrot.slane %v309, %v395
    %v397 = vadd.f32 %v392, %v396
    %v398 = vmax.f32 %v397, 0.0
    %400 = vset.pattern.permute.xlu0 0
    %401 = vperm.xlu0 %400, %v398
    %v402 = vpop.permute.xlu0 %401
    %v404 = vlaneseq
    %v405 = vshrl.u32 %v404, 7
    %v406 = vsub.s32 3, %v405
    %v407 = vrot.slane %v309, %v406
    %v408 = vmul.f32 %v402, %v407
    %v409 = vlaneseq
    %v410 = vshrl.u32 %v409, 7
    %v411 = vsub.s32 7, %v410
    %v412 = vrot.slane %v309, %v411
    %v413 = vadd.f32 %v412, %v408
    %414 = vset.pattern.permute.xlu0 1
    %415 = vperm.xlu0 %414, %v398
    %v416 = vpop.permute.xlu0 %415
    %v418 = vlaneseq
    %v419 = vshrl.u32 %v418, 7
    %v420 = vsub.s32 4, %v419
    %v421 = vrot.slane %v309, %v420
    %v422 = vmul.f32 %v416, %v421
    %v423 = vadd.f32 %v413, %v422
    %424 = vset.pattern.permute.xlu0 2
    %425 = vperm.xlu0 %424, %v398
    %v426 = vpop.permute.xlu0 %425
    %v428 = vlaneseq
    %v429 = vshrl.u32 %v428, 7
    %v430 = vsub.s32 5, %v429
    %v431 = vrot.slane %v309, %v430
    %v432 = vmul.f32 %v426, %v431
    %v433 = vadd.f32 %v423, %v432
    %434 = vset.pattern.permute.xlu0 3
    %435 = vperm.xlu0 %434, %v398
    %v436 = vpop.permute.xlu0 %435
    %v438 = vlaneseq
    %v439 = vshrl.u32 %v438, 7
    %v440 = vsub.s32 6, %v439
    %v441 = vrot.slane %v309, %v440
    %v442 = vmul.f32 %v436, %v441
    %v443 = vadd.f32 %v433, %v442
    %vm444 = vcmask 31744
    %v445 = vsel %vm444, %v443, -inf
    %446 = vmax.xlane.f32.xlu0 %v445
    %v447 = vpop.xlane.xlu0 %446
    %v448 = vsub.f32 %v443, %v447
    %v449 = vmul.f32 %v448, 1.442695
    %v450 = vpow.pop %v449
    %v451 = vsel %vm444, %v450, 0.0
    %452 = vadd.xlane.f32.xlu0 %v451
    %v453 = vpop.xlane.xlu0 %452
    %v454 = vrcp.pop %v453
    %v455 = vmul.f32 %v450, %v454
    %456 = vst.msk [vmem:[%s3] sm:$0xff] %vm444, %v455
    // Predicated region
    $region18: #{cnn_forward.1} parent=1 // pred_check
      _
    $region19: #{cnn_forward.1} parent=1 // pred_check_branch
      %458 = sbr.rel (0) target = $region21
    $region20: #{cnn_forward.1} parent=1 // pred_region
      _
    $region21: #{cnn_forward.1} parent=1 // pred_fallthru
      _
    // Predicated region
    $region22: #{cnn_forward.1} parent=1 // pred_check
      _
    $region23: #{cnn_forward.1} parent=1 // pred_check_branch
      %460 = sbr.rel (0) target = $region25
    $region24: #{cnn_forward.1} parent=1 // pred_region
      _
    $region25: #{cnn_forward.1} parent=1 // pred_fallthru
      _
    %461 = vsyncpa [#allocation3], 1

</llo_original>
